<compile_context>
chip_gen: v7x
topology: tpu7x:2x2x1
jax: 0.10.0
libtpu: 0.0.40
codegen_flags: <defaults>
</compile_context>

<pallas_src>
import functools

import jax
import jax.numpy as jnp
from jax.experimental import pallas as pl
from jax.experimental.pallas import tpu as pltpu

_H = 16          # hidden width of each head (from the PyTorch module)
_HP = 2 * _H     # packed/fused hidden width (action ++ value)


def _net_kernel(x_ref, w_ref, b_ref, out_ref, *, n_actions):
    """x_ref: (bm, 32) zero-padded states; w_ref: (3,32,32); b_ref: (3,32);
    out_ref: (bm, n_actions+1)  [softmax probs | value]."""
    x = x_ref[...]
    b = b_ref[...]

    # fused layer 1: [action_fc1 | value_fc1]  -> ReLU
    h = jnp.dot(x, w_ref[0], preferred_element_type=jnp.float32) + b[0:1, :]
    h = jnp.maximum(h, 0.0)
    # fused layer 2: blockdiag(action_fc2, value_fc2) -> ReLU
    h = jnp.dot(h, w_ref[1], preferred_element_type=jnp.float32) + b[1:2, :]
    h = jnp.maximum(h, 0.0)
    # fused layer 3: blockdiag(action_fc3, value_fc3) (padded to 32 cols)
    z = jnp.dot(h, w_ref[2], preferred_element_type=jnp.float32) + b[2:3, :]

    # softmax over the first n_actions lanes
    logits = z[:, :n_actions]
    m = jnp.max(logits, axis=-1, keepdims=True)
    e = jnp.exp(logits - m)
    probs = e * pl.reciprocal(jnp.sum(e, axis=-1, keepdims=True), approx=True)

    out_ref[:, :n_actions] = probs
    out_ref[:, n_actions:n_actions + 1] = z[:, n_actions:n_actions + 1]


def pack_params(params, n_states, n_actions):
    """One-time packing of per-layer (PyTorch-style) params into 2 slabs."""
    assert n_states <= _HP and n_actions + 1 <= _HP
    W = jnp.zeros((3, _HP, _HP), jnp.float32)
    b = jnp.zeros((3, _HP), jnp.float32)

    # layer 1: rows 0..n_states, cols [0:16] = action, [16:32] = value
    W = W.at[0, :n_states, :_H].set(params["wa1"])
    W = W.at[0, :n_states, _H:].set(params["wv1"])
    b = b.at[0, :_H].set(params["ba1"][0])
    b = b.at[0, _H:].set(params["bv1"][0])
    # layer 2: block diagonal
    W = W.at[1, :_H, :_H].set(params["wa2"])
    W = W.at[1, _H:, _H:].set(params["wv2"])
    b = b.at[1, :_H].set(params["ba2"][0])
    b = b.at[1, _H:].set(params["bv2"][0])
    # layer 3: action -> cols [0:n_actions], value -> col n_actions
    W = W.at[2, :_H, :n_actions].set(params["wa3"])
    W = W.at[2, _H:, n_actions:n_actions + 1].set(params["wv3"])
    b = b.at[2, :n_actions].set(params["ba3"][0])
    b = b.at[2, n_actions:n_actions + 1].set(params["bv3"][0])
    return {"W": W, "b": b}


def net_forward(x, packed, n_actions):
    """x: (B, n_states) float32. packed: {'W': (3,32,32), 'b': (3,32)}.
    Returns (action_probs (B, n_actions), value (B, 1))."""
    B, n_states = x.shape
    n_out = n_actions + 1

    # zero-pad the feature dim once (outside the kernel) so all matmuls are 32-wide
    x_pad = jnp.pad(x.astype(jnp.float32), ((0, 0), (0, _HP - n_states)))

    # batch tiling: single step for small B, 512-row tiles (parallel axis) otherwise
    bm = 512 if (B >= 512 and B % 512 == 0) else B
    grid = (B // bm,)

    kernel = functools.partial(_net_kernel, n_actions=n_actions)

    flops = 2 * B * _HP * _HP * 3
    bytes_accessed = 4 * (B * _HP + 3 * _HP * _HP + 3 * _HP + B * n_out)
    cost = pl.CostEstimate(flops=flops,
                           transcendentals=B * n_out,
                           bytes_accessed=bytes_accessed)

    out = pl.pallas_call(
        kernel,
        out_shape=jax.ShapeDtypeStruct((B, n_out), jnp.float32),
        grid_spec=pltpu.PrefetchScalarGridSpec(
            num_scalar_prefetch=0,
            grid=grid,
            in_specs=[
                pl.BlockSpec((bm, _HP), lambda i: (i, 0)),
                pl.BlockSpec((3, _HP, _HP), lambda i: (0, 0, 0)),
                pl.BlockSpec((3, _HP), lambda i: (0, 0)),
            ],
            out_specs=pl.BlockSpec((bm, n_out), lambda i: (i, 0)),
        ),
        compiler_params=pltpu.CompilerParams(
            dimension_semantics=("parallel",)),
        cost_estimate=cost,
    )(x_pad, packed["W"], packed["b"])

    return out[:, :n_actions], out[:, n_actions:n_actions + 1]


def init_params(key, n_states, n_actions):
    """Deterministic init mimicking PyTorch Linear default (U[-1/sqrt(fan_in), +])."""
    def linear(key, fan_in, fan_out):
        kw, kb = jax.random.split(key)
        bound = 1.0 / jnp.sqrt(jnp.float32(fan_in))
        w = jax.random.uniform(kw, (fan_in, fan_out), jnp.float32, -bound, bound)
        b = jax.random.uniform(kb, (1, fan_out), jnp.float32, -bound, bound)
        return w, b

    keys = jax.random.split(key, 6)
    wa1, ba1 = linear(keys[0], n_states, _H)
    wa2, ba2 = linear(keys[1], _H, _H)
    wa3, ba3 = linear(keys[2], _H, n_actions)
    wv1, bv1 = linear(keys[3], n_states, _H)
    wv2, bv2 = linear(keys[4], _H, _H)
    wv3, bv3 = linear(keys[5], _H, 1)
    return dict(wa1=wa1, ba1=ba1, wa2=wa2, ba2=ba2, wa3=wa3, ba3=ba3,
                wv1=wv1, bv1=bv1, wv2=wv2, bv2=bv2, wv3=wv3, bv3=bv3)


def net_forward_ref(x, p):
    """Pure-JAX reference mirroring the PyTorch forward."""
    h = jnp.maximum(x @ p["wa1"] + p["ba1"], 0.0)
    h = jnp.maximum(h @ p["wa2"] + p["ba2"], 0.0)
    logits = h @ p["wa3"] + p["ba3"]
    action = jax.nn.softmax(logits, axis=-1)
    v = jnp.maximum(x @ p["wv1"] + p["bv1"], 0.0)
    v = jnp.maximum(v @ p["wv2"] + p["bv2"], 0.0)
    value = v @ p["wv3"] + p["bv3"]
    return action, value


if __name__ == "__main__":
    n_states, n_actions, batch = 4, 2, 2
    key = jax.random.PRNGKey(0)
    kx, kp = jax.random.split(key)
    x = jax.random.normal(kx, (batch, n_states), jnp.float32)
    params = init_params(kp, n_states, n_actions)
    packed = pack_params(params, n_states, n_actions)

    action, value = jax.block_until_ready(net_forward(x, packed, n_actions))
    action_ref, value_ref = net_forward_ref(x, params)

    assert action.shape == (batch, n_actions) and value.shape == (batch, 1)
    # approx reciprocal in softmax -> ~1e-3-level tolerance on probs
    assert jnp.allclose(action, action_ref, atol=2e-3, rtol=2e-3)
    assert jnp.allclose(value, value_ref, atol=1e-5, rtol=1e-5)
    print("KERNEL_OK")
</pallas_src>

<mosaic_0001>
module attributes {stable_mosaic.version = 11 : i64} {
  func.func @_net_kernel(%arg0: i32, %arg1: memref<2x32xf32, #tpu.memory_space<vmem>>, %arg2: memref<3x32x32xf32, #tpu.memory_space<vmem>>, %arg3: memref<3x32xf32, #tpu.memory_space<vmem>>, %arg4: memref<2x3xf32, #tpu.memory_space<vmem>>) attributes {dimension_semantics = [#tpu.dimension_semantics<parallel>], iteration_bounds = array<i64: 1>, scalar_prefetch = 0 : i64, scratch_operands = 0 : i64, tpu.core_type = #tpu.core_type<tc>, window_params = [{transform_indices = @transform_0, window_bounds = array<i64: 2, 32>}, {pipeline_mode = #tpu.pipeline_mode<synchronous>, transform_indices = @transform_1, window_bounds = array<i64: 3, 32, 32>}, {pipeline_mode = #tpu.pipeline_mode<synchronous>, transform_indices = @transform_2, window_bounds = array<i64: 3, 32>}, {transform_indices = @transform_3, window_bounds = array<i64: 2, 3>}]} {
    %c0 = arith.constant 0 : index
    %c0_0 = arith.constant 0 : index
    %0 = vector.load %arg1[%c0, %c0_0] : memref<2x32xf32, #tpu.memory_space<vmem>>, vector<2x32xf32>
    %c0_1 = arith.constant 0 : index
    %c0_2 = arith.constant 0 : index
    %1 = vector.load %arg3[%c0_1, %c0_2] : memref<3x32xf32, #tpu.memory_space<vmem>>, vector<3x32xf32>
    %c0_3 = arith.constant 0 : index
    %c0_4 = arith.constant 0 : index
    %c0_5 = arith.constant 0 : index
    %2 = vector.load %arg2[%c0_3, %c0_4, %c0_5] : memref<3x32x32xf32, #tpu.memory_space<vmem>>, vector<1x32x32xf32>
    %3 = vector.shape_cast %2 : vector<1x32x32xf32> to vector<32x32xf32>
    %cst = arith.constant dense<0.000000e+00> : vector<2x32xf32>
    %4 = tpu.matmul %0, %3, %cst {dimension_numbers = #tpu.dot_dimension_numbers<[1], [0], [0], [1], [0, 0, 1, 1], [], []>} : vector<2x32xf32>, vector<32x32xf32>, vector<2x32xf32> -> vector<2x32xf32>
    %5 = vector.extract_strided_slice %1 {offsets = [0, 0], sizes = [1, 32], strides = [1, 1]} : vector<3x32xf32> to vector<1x32xf32>
    %6 = vector.broadcast %5 : vector<1x32xf32> to vector<2x32xf32>
    %7 = arith.addf %4, %6 : vector<2x32xf32>
    %cst_6 = arith.constant 0.000000e+00 : f32
    %8 = vector.broadcast %cst_6 : f32 to vector<2x32xf32>
    %9 = arith.maximumf %7, %8 : vector<2x32xf32>
    %c1 = arith.constant 1 : index
    %c0_7 = arith.constant 0 : index
    %c0_8 = arith.constant 0 : index
    %10 = vector.load %arg2[%c1, %c0_7, %c0_8] : memref<3x32x32xf32, #tpu.memory_space<vmem>>, vector<1x32x32xf32>
    %11 = vector.shape_cast %10 : vector<1x32x32xf32> to vector<32x32xf32>
    %cst_9 = arith.constant dense<0.000000e+00> : vector<2x32xf32>
    %12 = tpu.matmul %9, %11, %cst_9 {dimension_numbers = #tpu.dot_dimension_numbers<[1], [0], [0], [1], [0, 0, 1, 1], [], []>} : vector<2x32xf32>, vector<32x32xf32>, vector<2x32xf32> -> vector<2x32xf32>
    %13 = vector.extract_strided_slice %1 {offsets = [1, 0], sizes = [1, 32], strides = [1, 1]} : vector<3x32xf32> to vector<1x32xf32>
    %14 = vector.broadcast %13 : vector<1x32xf32> to vector<2x32xf32>
    %15 = arith.addf %12, %14 : vector<2x32xf32>
    %cst_10 = arith.constant 0.000000e+00 : f32
    %16 = vector.broadcast %cst_10 : f32 to vector<2x32xf32>
    %17 = arith.maximumf %15, %16 : vector<2x32xf32>
    %c2 = arith.constant 2 : index
    %c0_11 = arith.constant 0 : index
    %c0_12 = arith.constant 0 : index
    %18 = vector.load %arg2[%c2, %c0_11, %c0_12] : memref<3x32x32xf32, #tpu.memory_space<vmem>>, vector<1x32x32xf32>
    %19 = vector.shape_cast %18 : vector<1x32x32xf32> to vector<32x32xf32>
    %cst_13 = arith.constant dense<0.000000e+00> : vector<2x32xf32>
    %20 = tpu.matmul %17, %19, %cst_13 {dimension_numbers = #tpu.dot_dimension_numbers<[1], [0], [0], [1], [0, 0, 1, 1], [], []>} : vector<2x32xf32>, vector<32x32xf32>, vector<2x32xf32> -> vector<2x32xf32>
    %21 = vector.extract_strided_slice %1 {offsets = [2, 0], sizes = [1, 32], strides = [1, 1]} : vector<3x32xf32> to vector<1x32xf32>
    %22 = vector.broadcast %21 : vector<1x32xf32> to vector<2x32xf32>
    %23 = arith.addf %20, %22 : vector<2x32xf32>
    %24 = vector.extract_strided_slice %23 {offsets = [0, 0], sizes = [2, 2], strides = [1, 1]} : vector<2x32xf32> to vector<2x2xf32>
    %cst_14 = arith.constant dense<0xFF800000> : vector<2xf32>
    %25 = vector.multi_reduction <maximumf>, %24, %cst_14 [1] : vector<2x2xf32> to vector<2xf32>
    %26 = vector.shape_cast %25 : vector<2xf32> to vector<2x1xf32>
    %27 = vector.broadcast %26 : vector<2x1xf32> to vector<2x2xf32>
    %28 = arith.subf %24, %27 : vector<2x2xf32>
    %29 = math.exp %28 : vector<2x2xf32>
    %cst_15 = arith.constant dense<0.000000e+00> : vector<2xf32>
    %30 = vector.multi_reduction <add>, %29, %cst_15 [1] : vector<2x2xf32> to vector<2xf32>
    %31 = vector.shape_cast %30 : vector<2xf32> to vector<2x1xf32>
    %32 = tpu.reciprocal %31 {approx = true} : vector<2x1xf32> -> vector<2x1xf32>
    %33 = vector.broadcast %32 : vector<2x1xf32> to vector<2x2xf32>
    %34 = arith.mulf %29, %33 : vector<2x2xf32>
    %c0_16 = arith.constant 0 : index
    %c0_17 = arith.constant 0 : index
    %35 = vector.load %arg4[%c0_16, %c0_17] : memref<2x3xf32, #tpu.memory_space<vmem>>, vector<2x2xf32>
    tpu.vector_store %arg4[%c0_16, %c0_17], %34 {strides = array<i32>} : memref<2x3xf32, #tpu.memory_space<vmem>>, vector<2x2xf32>,
    %36 = vector.extract_strided_slice %23 {offsets = [0, 2], sizes = [2, 1], strides = [1, 1]} : vector<2x32xf32> to vector<2x1xf32>
    %c0_18 = arith.constant 0 : index
    %c2_19 = arith.constant 2 : index
    %37 = vector.load %arg4[%c0_18, %c2_19] : memref<2x3xf32, #tpu.memory_space<vmem>>, vector<2x1xf32>
    tpu.vector_store %arg4[%c0_18, %c2_19], %36 {strides = array<i32>} : memref<2x3xf32, #tpu.memory_space<vmem>>, vector<2x1xf32>,
    return
  }
  func.func @transform_0(%arg0: i32) -> (i32, i32) {
    %c0_i32 = arith.constant 0 : i32
    %c0_i32_0 = arith.constant 0 : i32
    return %arg0, %c0_i32 : i32, i32
  }
  func.func @transform_1(%arg0: i32) -> (i32, i32, i32) {
    %c0_i32 = arith.constant 0 : i32
    %c0_i32_0 = arith.constant 0 : i32
    %c0_i32_1 = arith.constant 0 : i32
    %c0_i32_2 = arith.constant 0 : i32
    return %c0_i32, %c0_i32_0, %c0_i32_1 : i32, i32, i32
  }
  func.func @transform_2(%arg0: i32) -> (i32, i32) {
    %c0_i32 = arith.constant 0 : i32
    %c0_i32_0 = arith.constant 0 : i32
    %c0_i32_1 = arith.constant 0 : i32
    return %c0_i32, %c0_i32_0 : i32, i32
  }
  func.func @transform_3(%arg0: i32) -> (i32, i32) {
    %c0_i32 = arith.constant 0 : i32
    %c0_i32_0 = arith.constant 0 : i32
    return %arg0, %c0_i32 : i32, i32
  }
}

</mosaic_0001>

<llo_original>
// kernel: tpu_custom_call.1
$region0: #{tpu_custom_call.1}
  #allocation0 [shape = 'u32[]', space=smem, size = 0x4, offset = 0x4, fixed_abs, tag = 'smem constant byte address 0x4 - core index']
  #allocation1 [shape = 'u32[144,128]{1,0:T(1,128)}', space=vmem, size = 0x12000, scoped, tag = 'internal scratch']
  %s0 = inlined_call_operand.hbm [shape: f32[2,32], index: 0, kind: input, shape index: {}]
  %s1 = inlined_call_operand.hbm [shape: f32[3,32,32], index: 1, kind: input, shape index: {}]
  %s2 = inlined_call_operand.vmem [shape: f32[3,32], index: 2, kind: input, shape index: {}]
  %s3 = inlined_call_operand.hbm [shape: f32[2,3], index: 3, kind: output, shape index: {}]
  %s4 = sld [smem:[#allocation0]]
  $region30: #{tpu_custom_call.1} parent=0
    _
  %s6 = ssub.s32 1, %s4
  %s7 = scalar_select 0, %s6, %s4
  $region1: #{tpu_custom_call.1} parent=0
    #allocation2 [shape = 'u8[1024]{0}', space=vmem, size = 0x400, scoped, tag = 'input window, operand 0, single buffered']
    #allocation3 [shape = 's32[1]{0}', space=sflag, size = 0x4, scoped, tag = 'scoped memory for tpu_custom_call.1']
    #allocation4 [shape = 's32[1]{0}', space=sflag, size = 0x4, scoped, tag = 'scoped memory for tpu_custom_call.1']
    #allocation5 [shape = 'u8[49152]{0}', space=vmem, size = 0xc000, scoped, tag = 'input window, operand 1, single buffered']
    #allocation6 [shape = 's32[1]{0}', space=sflag, size = 0x4, scoped, tag = 'scoped memory for tpu_custom_call.1']
    #allocation7 [shape = 'u8[1024]{0}', space=vmem, size = 0x400, scoped, tag = 'output window, operand 0, single buffered']
    %8 = vsyncpa [#allocation3], 0
    %9 = vsyncpa [#allocation6], 0
    %10 = vsyncpa [#allocation4], 0
    // Predicated region
    $region2: #{tpu_custom_call.1} parent=1 // pred_check
      _
    $region3: #{tpu_custom_call.1} parent=1 // pred_check_branch
      %12 = sbr.rel (0) target = $region5
    $region4: #{tpu_custom_call.1} parent=1 // pred_region
      %s14 = ssub.s32 32, 32
      %15 = vsyncadd [#allocation3], %s14
      %s17 = sshll.u32 [#allocation2], 4
      %s18 = int_to_ptr.vmem [resolvable:$true] %s17
      %20 = dma.hbm_to_vmem [thread:$0]  %s0, 32, %s18, [#allocation3]
    $region5: #{tpu_custom_call.1} parent=1 // pred_fallthru
      _
    // Predicated region
    $region6: #{tpu_custom_call.1} parent=1 // pred_check
      _
    $region7: #{tpu_custom_call.1} parent=1 // pred_check_branch
      %22 = sbr.rel (0) target = $region9
    $region8: #{tpu_custom_call.1} parent=1 // pred_region
      %s24 = ssub.s32 1536, 1536
      %25 = vsyncadd [#allocation6], %s24
      %s26 = sshll.u32 [#allocation5], 4
      %s27 = int_to_ptr.vmem [resolvable:$true] %s26
      %32 = dma.hbm_to_vmem [thread:$0]  %s1, 1536, %s27, [#allocation6], 128, 128, 8
    $region9: #{tpu_custom_call.1} parent=1 // pred_fallthru
      _
    // Predicated region
    $region10: #{tpu_custom_call.1} parent=1 // pred_check
      _
    $region11: #{tpu_custom_call.1} parent=1 // pred_check_branch
      %34 = sbr.rel (0) target = $region13
    $region12: #{tpu_custom_call.1} parent=1 // pred_region
      _
    $region13: #{tpu_custom_call.1} parent=1 // pred_fallthru
      _
    // Predicated region
    $region14: #{tpu_custom_call.1} parent=1 // pred_check
      _
    $region15: #{tpu_custom_call.1} parent=1 // pred_check_branch
      %36 = sbr.rel (0) target = $region17
    $region16: #{tpu_custom_call.1} parent=1 // pred_region
      %37 = dma.done [#allocation3], 32
    $region17: #{tpu_custom_call.1} parent=1 // pred_fallthru
      _
    // Predicated region
    $region18: #{tpu_custom_call.1} parent=1 // pred_check
      _
    $region19: #{tpu_custom_call.1} parent=1 // pred_check_branch
      %39 = sbr.rel (0) target = $region21
    $region20: #{tpu_custom_call.1} parent=1 // pred_region
      %40 = dma.done [#allocation6], 1536
    $region21: #{tpu_custom_call.1} parent=1 // pred_fallthru
      _
    %v41 = vld [vmem:[#allocation2] sm:$0x3]
    %v42 = vld [vmem:[%s2] sm:$0x7]
    %v43 = vld [vmem:[#allocation5] sm:$0xff]
    %v44 = vld [vmem:[#allocation5 + $0x8] sm:$0xff]
    %v45 = vld [vmem:[#allocation5 + $0x10] sm:$0xff]
    %v46 = vld [vmem:[#allocation5 + $0x18] sm:$0xff]
    %v47 = vlaneseq
    %v48 = vshrl.u32 %v47, 7
    %v49 = vsub.s32 0, %v48
    %v50 = vrot.slane %v42, %v49
    %vm51 = vcmask 261120
    %v53 = vsel %vm51, %v41, 0
    %55 = vmatprep.subr.mxu0 0.0
    %56 = vmatpush1.msra.mxu0 %v43
    %57 = vmatprep.subr.mxu0 0.0
    %58 = vmatpush1.msra.mxu0 %v44
    %59 = vmatprep.subr.mxu0 0.0
    %60 = vmatpush1.msra.mxu0 %v45
    %61 = vmatprep.subr.mxu0 0.0
    %62 = vmatpush1.msra.mxu0 %v46
    %63 = vmatprep.subr.mxu0 0.0
    %64 = vmatpush1.msra.mxu0 0.0
    %65 = vmatprep.subr.mxu0 0.0
    %66 = vmatpush1.msra.mxu0 0.0
    %67 = vmatprep.subr.mxu0 0.0
    %68 = vmatpush1.msra.mxu0 0.0
    %69 = vmatprep.subr.mxu0 0.0
    %70 = vmatpush1.msra.mxu0 0.0
    %71 = vmatprep.subr.mxu0 0.0
    %72 = vmatpush1.msra.mxu0 0.0
    %73 = vmatprep.subr.mxu0 0.0
    %74 = vmatpush1.msra.mxu0 0.0
    %75 = vmatprep.subr.mxu0 0.0
    %76 = vmatpush1.msra.mxu0 0.0
    %77 = vmatprep.subr.mxu0 0.0
    %78 = vmatpush1.msra.mxu0 0.0
    %79 = vmatprep.subr.mxu0 0.0
    %80 = vmatpush1.msra.mxu0 0.0
    %81 = vmatprep.subr.mxu0 0.0
    %82 = vmatpush1.msra.mxu0 0.0
    %83 = vmatprep.subr.mxu0 0.0
    %84 = vmatpush1.msra.mxu0 0.0
    %85 = vmatprep.subr.mxu0 0.0
    %86 = vmatpush1.msra.mxu0 0.0
    %87 = vmatprep.subr.mxu0 0.0
    %88 = vmatpush1.msra.mxu0 0.0
    %89 = vmatprep.subr.mxu0 0.0
    %90 = vmatpush1.msra.mxu0 0.0
    %91 = vmatprep.subr.mxu0 0.0
    %92 = vmatpush1.msra.mxu0 0.0
    %93 = vmatprep.subr.mxu0 0.0
    %94 = vmatpush1.msra.mxu0 0.0
    %95 = vmatprep.subr.mxu0 0.0
    %96 = vmatpush1.msra.mxu0 0.0
    %97 = vmatprep.subr.mxu0 0.0
    %98 = vmatpush1.msra.mxu0 0.0
    %99 = vmatprep.subr.mxu0 0.0
    %100 = vmatpush1.msra.mxu0 0.0
    %101 = vmatprep.subr.mxu0 0.0
    %102 = vmatpush1.msra.mxu0 0.0
    %103 = vmatprep.subr.mxu0 0.0
    %104 = vmatpush1.msra.mxu0 0.0
    %105 = vmatprep.subr.mxu0 0.0
    %106 = vmatpush1.msra.mxu0 0.0
    %107 = vmatprep.subr.mxu0 0.0
    %108 = vmatpush1.msra.mxu0 0.0
    %109 = vmatprep.subr.mxu0 0.0
    %110 = vmatpush1.msra.mxu0 0.0
    %111 = vmatprep.subr.mxu0 0.0
    %112 = vmatpush1.msra.mxu0 0.0
    %113 = vmatprep.subr.mxu0 0.0
    %114 = vmatpush1.msra.mxu0 0.0
    %115 = vmatprep.subr.mxu0 0.0
    %116 = vmatpush1.msra.mxu0 0.0
    %117 = vmatprep.subr.mxu0 0.0
    %118 = vmatpush1.msra.mxu0 0.0
    %119 = vmatprep.mubr.f32.mxu0 0.0
    %120 = vmatmul.mubr.f32.gmra.mrb[0].mxu0 %v53
    %v121 = vpop.f32.mrb[0].mxu0
    %v122 = vadd.f32 %v50, %v121
    %v123 = vpop.f32.mrb[0].mxu0
    %124 = vdwg.mxu0
    %v125 = vmax.f32 %v122, 0.0
    %s126 = scalar_lea.vmem [#allocation5], 32
    %v127 = vld [vmem:[%s126] sm:$0xff]
    %v128 = vld [vmem:[%s126 + $0x8] sm:$0xff]
    %v129 = vld [vmem:[%s126 + $0x10] sm:$0xff]
    %v130 = vld [vmem:[%s126 + $0x18] sm:$0xff]
    %v131 = vlaneseq
    %v132 = vshrl.u32 %v131, 7
    %v133 = vsub.s32 1, %v132
    %v134 = vrot.slane %v42, %v133
    %v136 = vsel %vm51, %v125, 0
    %138 = vmatprep.subr.mxu0 0.0
    %139 = vmatpush1.msra.mxu0 %v127
    %140 = vmatprep.subr.mxu0 0.0
    %141 = vmatpush1.msra.mxu0 %v128
    %142 = vmatprep.subr.mxu0 0.0
    %143 = vmatpush1.msra.mxu0 %v129
    %144 = vmatprep.subr.mxu0 0.0
    %145 = vmatpush1.msra.mxu0 %v130
    %146 = vmatprep.subr.mxu0 0.0
    %147 = vmatpush1.msra.mxu0 0.0
    %148 = vmatprep.subr.mxu0 0.0
    %149 = vmatpush1.msra.mxu0 0.0
    %150 = vmatprep.subr.mxu0 0.0
    %151 = vmatpush1.msra.mxu0 0.0
    %152 = vmatprep.subr.mxu0 0.0
    %153 = vmatpush1.msra.mxu0 0.0
    %154 = vmatprep.subr.mxu0 0.0
    %155 = vmatpush1.msra.mxu0 0.0
    %156 = vmatprep.subr.mxu0 0.0
    %157 = vmatpush1.msra.mxu0 0.0
    %158 = vmatprep.subr.mxu0 0.0
    %159 = vmatpush1.msra.mxu0 0.0
    %160 = vmatprep.subr.mxu0 0.0
    %161 = vmatpush1.msra.mxu0 0.0
    %162 = vmatprep.subr.mxu0 0.0
    %163 = vmatpush1.msra.mxu0 0.0
    %164 = vmatprep.subr.mxu0 0.0
    %165 = vmatpush1.msra.mxu0 0.0
    %166 = vmatprep.subr.mxu0 0.0
    %167 = vmatpush1.msra.mxu0 0.0
    %168 = vmatprep.subr.mxu0 0.0
    %169 = vmatpush1.msra.mxu0 0.0
    %170 = vmatprep.subr.mxu0 0.0
    %171 = vmatpush1.msra.mxu0 0.0
    %172 = vmatprep.subr.mxu0 0.0
    %173 = vmatpush1.msra.mxu0 0.0
    %174 = vmatprep.subr.mxu0 0.0
    %175 = vmatpush1.msra.mxu0 0.0
    %176 = vmatprep.subr.mxu0 0.0
    %177 = vmatpush1.msra.mxu0 0.0
    %178 = vmatprep.subr.mxu0 0.0
    %179 = vmatpush1.msra.mxu0 0.0
    %180 = vmatprep.subr.mxu0 0.0
    %181 = vmatpush1.msra.mxu0 0.0
    %182 = vmatprep.subr.mxu0 0.0
    %183 = vmatpush1.msra.mxu0 0.0
    %184 = vmatprep.subr.mxu0 0.0
    %185 = vmatpush1.msra.mxu0 0.0
    %186 = vmatprep.subr.mxu0 0.0
    %187 = vmatpush1.msra.mxu0 0.0
    %188 = vmatprep.subr.mxu0 0.0
    %189 = vmatpush1.msra.mxu0 0.0
    %190 = vmatprep.subr.mxu0 0.0
    %191 = vmatpush1.msra.mxu0 0.0
    %192 = vmatprep.subr.mxu0 0.0
    %193 = vmatpush1.msra.mxu0 0.0
    %194 = vmatprep.subr.mxu0 0.0
    %195 = vmatpush1.msra.mxu0 0.0
    %196 = vmatprep.subr.mxu0 0.0
    %197 = vmatpush1.msra.mxu0 0.0
    %198 = vmatprep.subr.mxu0 0.0
    %199 = vmatpush1.msra.mxu0 0.0
    %200 = vmatprep.subr.mxu0 0.0
    %201 = vmatpush1.msra.mxu0 0.0
    %202 = vmatprep.mubr.f32.mxu0 0.0
    %203 = vmatmul.mubr.f32.gmra.mrb[0].mxu0 %v136
    %v204 = vpop.f32.mrb[0].mxu0
    %v205 = vadd.f32 %v134, %v204
    %v206 = vpop.f32.mrb[0].mxu0
    %207 = vdwg.mxu0
    %v208 = vmax.f32 %v205, 0.0
    %s209 = scalar_lea.vmem [#allocation5], 64
    %v210 = vld [vmem:[%s209] sm:$0xff]
    %v211 = vld [vmem:[%s209 + $0x8] sm:$0xff]
    %v212 = vld [vmem:[%s209 + $0x10] sm:$0xff]
    %v213 = vld [vmem:[%s209 + $0x18] sm:$0xff]
    %v214 = vlaneseq
    %v215 = vshrl.u32 %v214, 7
    %v216 = vsub.s32 2, %v215
    %v217 = vrot.slane %v42, %v216
    %v219 = vsel %vm51, %v208, 0
    %221 = vmatprep.subr.mxu0 0.0
    %222 = vmatpush1.msra.mxu0 %v210
    %223 = vmatprep.subr.mxu0 0.0
    %224 = vmatpush1.msra.mxu0 %v211
    %225 = vmatprep.subr.mxu0 0.0
    %226 = vmatpush1.msra.mxu0 %v212
    %227 = vmatprep.subr.mxu0 0.0
    %228 = vmatpush1.msra.mxu0 %v213
    %229 = vmatprep.subr.mxu0 0.0
    %230 = vmatpush1.msra.mxu0 0.0
    %231 = vmatprep.subr.mxu0 0.0
    %232 = vmatpush1.msra.mxu0 0.0
    %233 = vmatprep.subr.mxu0 0.0
    %234 = vmatpush1.msra.mxu0 0.0
    %235 = vmatprep.subr.mxu0 0.0
    %236 = vmatpush1.msra.mxu0 0.0
    %237 = vmatprep.subr.mxu0 0.0
    %238 = vmatpush1.msra.mxu0 0.0
    %239 = vmatprep.subr.mxu0 0.0
    %240 = vmatpush1.msra.mxu0 0.0
    %241 = vmatprep.subr.mxu0 0.0
    %242 = vmatpush1.msra.mxu0 0.0
    %243 = vmatprep.subr.mxu0 0.0
    %244 = vmatpush1.msra.mxu0 0.0
    %245 = vmatprep.subr.mxu0 0.0
    %246 = vmatpush1.msra.mxu0 0.0
    %247 = vmatprep.subr.mxu0 0.0
    %248 = vmatpush1.msra.mxu0 0.0
    %249 = vmatprep.subr.mxu0 0.0
    %250 = vmatpush1.msra.mxu0 0.0
    %251 = vmatprep.subr.mxu0 0.0
    %252 = vmatpush1.msra.mxu0 0.0
    %253 = vmatprep.subr.mxu0 0.0
    %254 = vmatpush1.msra.mxu0 0.0
    %255 = vmatprep.subr.mxu0 0.0
    %256 = vmatpush1.msra.mxu0 0.0
    %257 = vmatprep.subr.mxu0 0.0
    %258 = vmatpush1.msra.mxu0 0.0
    %259 = vmatprep.subr.mxu0 0.0
    %260 = vmatpush1.msra.mxu0 0.0
    %261 = vmatprep.subr.mxu0 0.0
    %262 = vmatpush1.msra.mxu0 0.0
    %263 = vmatprep.subr.mxu0 0.0
    %264 = vmatpush1.msra.mxu0 0.0
    %265 = vmatprep.subr.mxu0 0.0
    %266 = vmatpush1.msra.mxu0 0.0
    %267 = vmatprep.subr.mxu0 0.0
    %268 = vmatpush1.msra.mxu0 0.0
    %269 = vmatprep.subr.mxu0 0.0
    %270 = vmatpush1.msra.mxu0 0.0
    %271 = vmatprep.subr.mxu0 0.0
    %272 = vmatpush1.msra.mxu0 0.0
    %273 = vmatprep.subr.mxu0 0.0
    %274 = vmatpush1.msra.mxu0 0.0
    %275 = vmatprep.subr.mxu0 0.0
    %276 = vmatpush1.msra.mxu0 0.0
    %277 = vmatprep.subr.mxu0 0.0
    %278 = vmatpush1.msra.mxu0 0.0
    %279 = vmatprep.subr.mxu0 0.0
    %280 = vmatpush1.msra.mxu0 0.0
    %281 = vmatprep.subr.mxu0 0.0
    %282 = vmatpush1.msra.mxu0 0.0
    %283 = vmatprep.subr.mxu0 0.0
    %284 = vmatpush1.msra.mxu0 0.0
    %285 = vmatprep.mubr.f32.mxu0 0.0
    %286 = vmatmul.mubr.f32.gmra.mrb[0].mxu0 %v219
    %v287 = vpop.f32.mrb[0].mxu0
    %v288 = vadd.f32 %v217, %v287
    %v289 = vpop.f32.mrb[0].mxu0
    %290 = vdwg.mxu0
    %vm291 = vcmask 9216
    %v292 = vsel %vm291, %v288, -inf
    %293 = vmax.xlane.f32.xlu0 %v292
    %v294 = vpop.xlane.xlu0 %293
    %v295 = vsub.f32 %v288, %v294
    %v296 = vmul.f32 %v295, 1.442695
    %v297 = vpow.pop %v296
    %v298 = vsel %vm291, %v297, 0.0
    %299 = vadd.xlane.f32.xlu0 %v298
    %v300 = vpop.xlane.xlu0 %299
    %v301 = vrcp.pop %v300
    %v302 = vmul.f32 %v297, %v301
    %303 = vst.msk [vmem:[#allocation7] sm:$0x3] %vm291, %v302
    %vm304 = vcmask 17424
    %305 = vst.msk [vmem:[#allocation7] sm:$0x3] %vm304, %v288
    // Predicated region
    $region22: #{tpu_custom_call.1} parent=1 // pred_check
      _
    $region23: #{tpu_custom_call.1} parent=1 // pred_check_branch
      %307 = sbr.rel (0) target = $region25
    $region24: #{tpu_custom_call.1} parent=1 // pred_region
      %s309 = ssub.s32 32, 32
      %310 = vsyncadd [#allocation4], %s309
      %s312 = sshll.u32 [#allocation7], 4
      %s313 = int_to_ptr.vmem [resolvable:$true] %s312
      %315 = dma.vmem_to_hbm [thread:$0]  %s313, 32, %s3, [#allocation4]
    $region25: #{tpu_custom_call.1} parent=1 // pred_fallthru
      _
    // Predicated region
    $region26: #{tpu_custom_call.1} parent=1 // pred_check
      _
    $region27: #{tpu_custom_call.1} parent=1 // pred_check_branch
      %317 = sbr.rel (0) target = $region29
    $region28: #{tpu_custom_call.1} parent=1 // pred_region
      %318 = dma.done [#allocation4], 32
    $region29: #{tpu_custom_call.1} parent=1 // pred_fallthru
      _
    %319 = vsyncpa [#allocation3], 1
    %320 = vsyncpa [#allocation6], 1
    %321 = vsyncpa [#allocation4], 1

</llo_original>
